<compile_context>
chip_gen: v6e
topology: v6e:2x2x1
jax: 0.10.0
libtpu: 0.0.40
codegen_flags: <defaults>
</compile_context>

<pallas_src>
import jax
import jax.numpy as jnp
import numpy as np
from jax.experimental import pallas as pl
from jax.experimental.pallas import tpu as pltpu


# ----------------------------------------------------------------------------
# _IdentityParams (the spec module) -- plain JAX per the performance review.
# ----------------------------------------------------------------------------
def identity_params(batch_size, n=3, dtype=jnp.float32):
    """JAX equivalent of _IdentityParams._update: (batch_size, n, n) identities.

    No Pallas kernel: the (B, 3, 3) output is far below the (8, 128) vreg tile,
    so a kernel would be all masked partial stores + a compile per batch size;
    a broadcasted eye is free in XLA.
    """
    return jnp.broadcast_to(jnp.eye(n, dtype=dtype), (batch_size, n, n))


class IdentityParams:
    """JAX equivalent of _IdentityParams.forward.

    Caches by batch size.  JAX arrays are immutable, so returning the cached
    array matches torch's `.clone()` semantics; the torch `device` cache key is
    dropped (JAX handles placement).
    """

    def __init__(self):
        self._batch_size = 0
        self._identity_params = None

    def __call__(self, batch_size):
        if self._batch_size != batch_size or self._identity_params is None:
            self._identity_params = identity_params(batch_size)
            self._batch_size = batch_size
        return self._identity_params


# ----------------------------------------------------------------------------
# Photometric augmentation hot path (perf-reviewed Pallas kernel)
# ----------------------------------------------------------------------------
_MIN_GAMMA, _MAX_GAMMA = 0.8, 1.2
_MIN_BRGHT, _MAX_BRGHT = 0.5, 2.0
_MIN_SHIFT, _MAX_SHIFT = 0.8, 1.2


def _draw_photometric_params(key, batch, channels):
    """Per-batch gamma and fused per-(batch, channel) scale = brightness * shift (f32)."""
    kg, kb, ks = jax.random.split(key, 3)
    gamma = jax.random.uniform(kg, (batch,), jnp.float32) * (_MAX_GAMMA - _MIN_GAMMA) + _MIN_GAMMA
    brght = jax.random.uniform(kb, (batch,), jnp.float32) * (_MAX_BRGHT - _MIN_BRGHT) + _MIN_BRGHT
    shift = jax.random.uniform(ks, (batch, channels), jnp.float32) * (_MAX_SHIFT - _MIN_SHIFT) + _MIN_SHIFT
    return gamma, brght[:, None] * shift  # (B,), (B, C)


def _photo_kernel(p_ref, l_ref, r_ref, ol_ref, or_ref):
    """One sublane/lane-dense (R, T) tile of each view.

    p_ref: (R, 2) f32 block, column 0 = per-row gamma, column 1 = per-row
    brightness*shift (row = flattened (batch, channel)).
    Computes clip((x ** gamma_row) * scale_row, 0, 1) fully vectorized in f32.
    """
    p = p_ref[...].astype(jnp.float32)   # (R, 2)
    gamma = p[:, 0:1]                    # (R, 1): broadcasts over the lane axis
    scale = p[:, 1:2]                    # (R, 1)

    def apply(x_ref, o_ref):
        x = x_ref[...].astype(jnp.float32)                    # (R, T); math always in f32
        logx = jnp.log(jnp.maximum(x, jnp.float32(1e-30)))
        # NOTE: for x < 0 this yields 0 while the torch reference x**gamma gives
        # NaN; identical for images in [0, 1].
        powed = jnp.where(x > 0, jnp.exp(gamma * logx), jnp.float32(0.0))
        o_ref[...] = jnp.clip(powed * scale, 0.0, 1.0).astype(o_ref.dtype)

    apply(l_ref, ol_ref)
    apply(r_ref, or_ref)


def _round_up(x, m):
    return -(-x // m) * m


def _choose_tiles(rows, hw, target_block_bytes):
    """Sublane/lane-dense tile sizes; blocks sized on VMEM/roofline grounds only.

    Divisibility is NOT required: the grid uses cdiv and Pallas pads ragged
    reads / masks ragged writes.
    """
    # Row tile: 8 sublanes (full f32 vreg height); full extent when rows < 8
    # (a block dim equal to the full array dim is always legal).
    row_tile = 8 if rows >= 8 else rows
    # Lane tile: multiple of 128, sized so an f32 (row_tile, lane_tile) block
    # stays under target_block_bytes.
    max_lanes = max(128, (target_block_bytes // (row_tile * 4)) // 128 * 128)
    lane_tile = min(max_lanes, max(128, _round_up(hw, 128)))
    return row_tile, lane_tile


def photometric_augmentation(im_l1, im_r1, key, *, target_block_bytes=1 << 20):
    """clip((x ** gamma) * brightness * shift[c], 0, 1) applied to both views.

    Both views share gamma / brightness / per-channel shift (the torch module
    concatenates the views along channels and tiles the shift).  Here the views
    stay separate (2 inputs, 2 outputs, aliased) to avoid the extra HBM
    read+write of a concat and a slice-split.

    target_block_bytes: ~1 MiB is safe on v5e/v6e/v7x; raise to 2-4 MiB on v6e
    (128 MiB VMEM) to shave per-grid-step overhead.
    """
    b, c, h, w = im_l1.shape
    assert im_r1.shape == im_l1.shape
    rows, hw = b * c, h * w
    dtype = im_l1.dtype

    # Per-row (row = b*C + c) fused parameters: [gamma, brightness*shift].
    gamma, scale = _draw_photometric_params(key, b, c)          # (B,), (B, C)
    params = jnp.stack([jnp.repeat(gamma, c), scale.reshape(rows)], axis=-1)  # (B*C, 2) f32

    # Free (contiguous) reshape to a sublane/lane-dense (B*C, H*W) layout.
    xl = im_l1.reshape(rows, hw)
    xr = im_r1.reshape(rows, hw)

    row_tile, lane_tile = _choose_tiles(rows, hw, target_block_bytes)
    grid = (pl.cdiv(rows, row_tile), pl.cdiv(hw, lane_tile))

    img_spec = pl.BlockSpec((row_tile, lane_tile), lambda i, j: (i, j))
    prm_spec = pl.BlockSpec((row_tile, 2), lambda i, j: (i, 0))

    out_l, out_r = pl.pallas_call(
        _photo_kernel,
        out_shape=(jax.ShapeDtypeStruct((rows, hw), dtype),
                   jax.ShapeDtypeStruct((rows, hw), dtype)),
        grid=grid,
        in_specs=[prm_spec, img_spec, img_spec],
        out_specs=(img_spec, img_spec),
        input_output_aliases={1: 0, 2: 1},   # donate the two image inputs
        compiler_params=pltpu.CompilerParams(
            dimension_semantics=("parallel", "parallel")),
    )(params, xl, xr)

    return out_l.reshape(b, c, h, w), out_r.reshape(b, c, h, w)


def _photometric_reference(im_l1, im_r1, key):
    """Pure-JAX reference (identical RNG draws as the kernel path)."""
    b, c, _, _ = im_l1.shape
    gamma, scale = _draw_photometric_params(key, b, c)
    gamma4 = gamma[:, None, None, None]
    scale4 = scale[:, :, None, None]

    def apply(x):
        y = jnp.clip((x.astype(jnp.float32) ** gamma4) * scale4, 0.0, 1.0)
        return y.astype(x.dtype)

    return apply(im_l1), apply(im_r1)


def augmentation_monodepth_baseline_forward(example_dict, key, photometric=True):
    """Augmentation forward. Coin flip via lax.cond so the function stays traceable."""
    im_l1 = example_dict["input_l1"]
    im_r1 = example_dict["input_r1"]
    if photometric:
        k_coin, k_aug = jax.random.split(key)
        coin = jax.random.uniform(k_coin, ()) > 0.5
        im_l1, im_r1 = jax.lax.cond(
            coin,
            lambda ops: photometric_augmentation(ops[0], ops[1], ops[2]),
            lambda ops: (ops[0], ops[1]),
            (im_l1, im_r1, k_aug),
        )
    out = dict(example_dict)
    out["input_l1"] = im_l1
    out["input_r1"] = im_r1
    return out


if __name__ == "__main__":
    # --- _IdentityParams (the spec module) ---
    ident = IdentityParams()
    eye_b = jax.block_until_ready(ident(2))
    np.testing.assert_allclose(
        np.asarray(eye_b), np.tile(np.eye(3, dtype=np.float32), (2, 1, 1)))
    assert ident(2).shape == (2, 3, 3)   # cache-hit path

    # --- Photometric augmentation hot path ---
    key = jax.random.PRNGKey(0)
    k_l, k_r, k_aug = jax.random.split(key, 3)

    # First shape: lane-aligned (hw multiple of 128).  Second: ragged rows and
    # ragged lanes, exercising the cdiv grid with masked writes.
    for shape in [(2, 3, 16, 16), (4, 3, 10, 20)]:
        im_l1 = jax.random.uniform(k_l, shape, jnp.float32)
        im_r1 = jax.random.uniform(k_r, shape, jnp.float32)
        out_l, out_r = photometric_augmentation(im_l1, im_r1, k_aug)
        jax.block_until_ready((out_l, out_r))
        ref_l, ref_r = _photometric_reference(im_l1, im_r1, k_aug)
        np.testing.assert_allclose(np.asarray(out_l), np.asarray(ref_l), rtol=1e-5, atol=1e-5)
        np.testing.assert_allclose(np.asarray(out_r), np.asarray(ref_r), rtol=1e-5, atol=1e-5)

    # Full augmentation forward (includes the 50% coin flip, traceable).
    im_l1 = jax.random.uniform(k_l, (2, 3, 16, 16), jnp.float32)
    im_r1 = jax.random.uniform(k_r, (2, 3, 16, 16), jnp.float32)
    result = augmentation_monodepth_baseline_forward(
        {"input_l1": im_l1, "input_r1": im_r1}, jax.random.PRNGKey(1))
    jax.block_until_ready((result["input_l1"], result["input_r1"]))

    print("KERNEL_OK")
</pallas_src>

<mosaic_0001>
module attributes {stable_mosaic.version = 11 : i64} {
  func.func @_photo_kernel(%arg0: i32, %arg1: i32, %arg2: memref<6x2xf32, #tpu.memory_space<vmem>>, %arg3: memref<6x256xf32, #tpu.memory_space<vmem>>, %arg4: memref<6x256xf32, #tpu.memory_space<vmem>>, %arg5: memref<6x256xf32, #tpu.memory_space<vmem>>, %arg6: memref<6x256xf32, #tpu.memory_space<vmem>>) attributes {dimension_semantics = [#tpu.dimension_semantics<parallel>, #tpu.dimension_semantics<parallel>], iteration_bounds = array<i64: 1, 1>, scalar_prefetch = 0 : i64, scratch_operands = 0 : i64, tpu.core_type = #tpu.core_type<tc>, window_params = [{transform_indices = @transform_0, window_bounds = array<i64: 6, 2>}, {transform_indices = @transform_1, window_bounds = array<i64: 6, 256>}, {transform_indices = @transform_2, window_bounds = array<i64: 6, 256>}, {transform_indices = @transform_3, window_bounds = array<i64: 6, 256>}, {transform_indices = @transform_4, window_bounds = array<i64: 6, 256>}]} {
    %c0 = arith.constant 0 : index
    %c0_0 = arith.constant 0 : index
    %0 = vector.load %arg2[%c0, %c0_0] : memref<6x2xf32, #tpu.memory_space<vmem>>, vector<6x2xf32>
    %1 = vector.extract_strided_slice %0 {offsets = [0, 0], sizes = [6, 1], strides = [1, 1]} : vector<6x2xf32> to vector<6x1xf32>
    %2 = vector.extract_strided_slice %0 {offsets = [0, 1], sizes = [6, 1], strides = [1, 1]} : vector<6x2xf32> to vector<6x1xf32>
    %c0_1 = arith.constant 0 : index
    %c0_2 = arith.constant 0 : index
    %3 = vector.load %arg3[%c0_1, %c0_2] : memref<6x256xf32, #tpu.memory_space<vmem>>, vector<6x256xf32>
    %cst = arith.constant 1.000000e-30 : f32
    %4 = vector.broadcast %cst : f32 to vector<6x256xf32>
    %5 = arith.maximumf %3, %4 : vector<6x256xf32>
    %6 = math.log %5 : vector<6x256xf32>
    %cst_3 = arith.constant 0.000000e+00 : f32
    %7 = vector.broadcast %cst_3 : f32 to vector<6x256xf32>
    %8 = arith.cmpf ogt, %3, %7 : vector<6x256xf32>
    %9 = vector.broadcast %1 : vector<6x1xf32> to vector<6x256xf32>
    %10 = arith.mulf %9, %6 : vector<6x256xf32>
    %11 = math.exp %10 : vector<6x256xf32>
    %cst_4 = arith.constant 0.000000e+00 : f32
    %12 = vector.broadcast %cst_4 : f32 to vector<6x256xf32>
    %13 = arith.select %8, %11, %12 : vector<6x256xi1>, vector<6x256xf32>
    %14 = vector.broadcast %2 : vector<6x1xf32> to vector<6x256xf32>
    %15 = arith.mulf %13, %14 : vector<6x256xf32>
    %cst_5 = arith.constant 0.000000e+00 : f32
    %cst_6 = arith.constant 1.000000e+00 : f32
    %16 = vector.broadcast %cst_5 : f32 to vector<6x256xf32>
    %17 = arith.maximumf %16, %15 : vector<6x256xf32>
    %18 = vector.broadcast %cst_6 : f32 to vector<6x256xf32>
    %19 = arith.minimumf %18, %17 : vector<6x256xf32>
    %c0_7 = arith.constant 0 : index
    %c0_8 = arith.constant 0 : index
    %20 = vector.load %arg5[%c0_7, %c0_8] : memref<6x256xf32, #tpu.memory_space<vmem>>, vector<6x256xf32>
    tpu.vector_store %arg5[%c0_7, %c0_8], %19 {strides = array<i32>} : memref<6x256xf32, #tpu.memory_space<vmem>>, vector<6x256xf32>,
    %c0_9 = arith.constant 0 : index
    %c0_10 = arith.constant 0 : index
    %21 = vector.load %arg4[%c0_9, %c0_10] : memref<6x256xf32, #tpu.memory_space<vmem>>, vector<6x256xf32>
    %cst_11 = arith.constant 1.000000e-30 : f32
    %22 = vector.broadcast %cst_11 : f32 to vector<6x256xf32>
    %23 = arith.maximumf %21, %22 : vector<6x256xf32>
    %24 = math.log %23 : vector<6x256xf32>
    %cst_12 = arith.constant 0.000000e+00 : f32
    %25 = vector.broadcast %cst_12 : f32 to vector<6x256xf32>
    %26 = arith.cmpf ogt, %21, %25 : vector<6x256xf32>
    %27 = vector.broadcast %1 : vector<6x1xf32> to vector<6x256xf32>
    %28 = arith.mulf %27, %24 : vector<6x256xf32>
    %29 = math.exp %28 : vector<6x256xf32>
    %cst_13 = arith.constant 0.000000e+00 : f32
    %30 = vector.broadcast %cst_13 : f32 to vector<6x256xf32>
    %31 = arith.select %26, %29, %30 : vector<6x256xi1>, vector<6x256xf32>
    %32 = vector.broadcast %2 : vector<6x1xf32> to vector<6x256xf32>
    %33 = arith.mulf %31, %32 : vector<6x256xf32>
    %cst_14 = arith.constant 0.000000e+00 : f32
    %cst_15 = arith.constant 1.000000e+00 : f32
    %34 = vector.broadcast %cst_14 : f32 to vector<6x256xf32>
    %35 = arith.maximumf %34, %33 : vector<6x256xf32>
    %36 = vector.broadcast %cst_15 : f32 to vector<6x256xf32>
    %37 = arith.minimumf %36, %35 : vector<6x256xf32>
    %c0_16 = arith.constant 0 : index
    %c0_17 = arith.constant 0 : index
    %38 = vector.load %arg6[%c0_16, %c0_17] : memref<6x256xf32, #tpu.memory_space<vmem>>, vector<6x256xf32>
    tpu.vector_store %arg6[%c0_16, %c0_17], %37 {strides = array<i32>} : memref<6x256xf32, #tpu.memory_space<vmem>>, vector<6x256xf32>,
    return
  }
  func.func @transform_0(%arg0: i32, %arg1: i32) -> (i32, i32) {
    %c0_i32 = arith.constant 0 : i32
    %c0_i32_0 = arith.constant 0 : i32
    return %arg0, %c0_i32 : i32, i32
  }
  func.func @transform_1(%arg0: i32, %arg1: i32) -> (i32, i32) {
    %c0_i32 = arith.constant 0 : i32
    return %arg0, %arg1 : i32, i32
  }
  func.func @transform_2(%arg0: i32, %arg1: i32) -> (i32, i32) {
    %c0_i32 = arith.constant 0 : i32
    return %arg0, %arg1 : i32, i32
  }
  func.func @transform_3(%arg0: i32, %arg1: i32) -> (i32, i32) {
    %c0_i32 = arith.constant 0 : i32
    return %arg0, %arg1 : i32, i32
  }
  func.func @transform_4(%arg0: i32, %arg1: i32) -> (i32, i32) {
    %c0_i32 = arith.constant 0 : i32
    return %arg0, %arg1 : i32, i32
  }
}

</mosaic_0001>

<llo_original>
// kernel: tpu_custom_call.1
$region0: #{tpu_custom_call.1}
  #allocation0 [shape = 'u32[]', space=smem, size = 0x4, offset = 0x4, fixed_abs, tag = 'smem constant byte address 0x4 - core index']
  #allocation1 [shape = 'u32[144,128]{1,0:T(1,128)}', space=vmem, size = 0x12000, scoped, tag = 'internal scratch']
  %s0 = inlined_call_operand.vmem [shape: f32[6,2], index: 0, kind: input, shape index: {}]
  %s1 = inlined_call_operand.hbm [shape: f32[6,256], index: 1, kind: input, shape index: {}, may-alias: {1,3}]
  %s2 = inlined_call_operand.hbm [shape: f32[6,256], index: 2, kind: input, shape index: {}, may-alias: {2,4}]
  %s3 = inlined_call_operand.hbm [shape: f32[6,256], index: 3, kind: output, shape index: {0}, may-alias: {1,3}]
  %s4 = inlined_call_operand.hbm [shape: f32[6,256], index: 4, kind: output, shape index: {1}, may-alias: {2,4}]
  %5 = xla_tuple %s3, %s4
  %s6 = sld [smem:[#allocation0]]
  $region38: #{tpu_custom_call.1} parent=0
    _
  %s8 = ssub.s32 1, %s6
  %s9 = scalar_select 0, %s8, %s6
  $region1: #{tpu_custom_call.1} parent=0
    #allocation2 [shape = 'u8[8192]{0}', space=vmem, size = 0x2000, scoped, tag = 'input window, operand 1, single buffered']
    #allocation3 [shape = 's32[1]{0}', space=sflag, size = 0x4, scoped, tag = 'scoped memory for tpu_custom_call.1']
    #allocation4 [shape = 's32[1]{0}', space=sflag, size = 0x4, scoped, tag = 'scoped memory for tpu_custom_call.1']
    #allocation5 [shape = 'u8[8192]{0}', space=vmem, size = 0x2000, scoped, tag = 'input window, operand 2, single buffered']
    #allocation6 [shape = 's32[1]{0}', space=sflag, size = 0x4, scoped, tag = 'scoped memory for tpu_custom_call.1']
    #allocation7 [shape = 'u8[8192]{0}', space=vmem, size = 0x2000, scoped, tag = 'output window, operand 0, single buffered']
    #allocation8 [shape = 'u8[8192]{0}', space=vmem, size = 0x2000, scoped, tag = 'output window, operand 1, single buffered']
    #allocation9 [shape = 's32[1]{0}', space=sflag, size = 0x4, scoped, tag = 'scoped memory for tpu_custom_call.1']
    %10 = vsyncpa [#allocation3], 0
    %11 = vsyncpa [#allocation6], 0
    %12 = vsyncpa [#allocation4], 0
    %13 = vsyncpa [#allocation9], 0
    // Predicated region
    $region2: #{tpu_custom_call.1} parent=1 // pred_check
      _
    $region3: #{tpu_custom_call.1} parent=1 // pred_check_branch
      %15 = sbr.rel (0) target = $region5
    $region4: #{tpu_custom_call.1} parent=1 // pred_region
      _
    $region5: #{tpu_custom_call.1} parent=1 // pred_fallthru
      _
    // Predicated region
    $region6: #{tpu_custom_call.1} parent=1 // pred_check
      _
    $region7: #{tpu_custom_call.1} parent=1 // pred_check_branch
      %17 = sbr.rel (0) target = $region9
    $region8: #{tpu_custom_call.1} parent=1 // pred_region
      %s19 = ssub.s32 256, 256
      %20 = vsyncadd [#allocation3], %s19
      %s22 = sshll.u32 [#allocation2], 4
      %s23 = int_to_ptr.vmem [resolvable:$true] %s22
      %25 = dma.hbm_to_vmem [thread:$0]  %s1, 256, %s23, [#allocation3]
    $region9: #{tpu_custom_call.1} parent=1 // pred_fallthru
      _
    // Predicated region
    $region10: #{tpu_custom_call.1} parent=1 // pred_check
      _
    $region11: #{tpu_custom_call.1} parent=1 // pred_check_branch
      %27 = sbr.rel (0) target = $region13
    $region12: #{tpu_custom_call.1} parent=1 // pred_region
      %s29 = ssub.s32 256, 256
      %30 = vsyncadd [#allocation6], %s29
      %s32 = sshll.u32 [#allocation5], 4
      %s33 = int_to_ptr.vmem [resolvable:$true] %s32
      %35 = dma.hbm_to_vmem [thread:$0]  %s2, 256, %s33, [#allocation6]
    $region13: #{tpu_custom_call.1} parent=1 // pred_fallthru
      _
    // Predicated region
    $region14: #{tpu_custom_call.1} parent=1 // pred_check
      _
    $region15: #{tpu_custom_call.1} parent=1 // pred_check_branch
      %37 = sbr.rel (0) target = $region17
    $region16: #{tpu_custom_call.1} parent=1 // pred_region
      %38 = dma.done [#allocation3], 256
    $region17: #{tpu_custom_call.1} parent=1 // pred_fallthru
      _
    // Predicated region
    $region18: #{tpu_custom_call.1} parent=1 // pred_check
      _
    $region19: #{tpu_custom_call.1} parent=1 // pred_check_branch
      %40 = sbr.rel (0) target = $region21
    $region20: #{tpu_custom_call.1} parent=1 // pred_region
      %41 = dma.done [#allocation6], 256
    $region21: #{tpu_custom_call.1} parent=1 // pred_fallthru
      _
    %v42 = vld [vmem:[%s0] sm:$0x3f]
    %v43 = vld [vmem:[#allocation2] sm:$0x3f]
    %v44 = vld [vmem:[#allocation2 + $0x8] sm:$0x3f]
    %v45 = vmax.f32 %v43, 1e-30
    %v46 = vmax.f32 %v44, 1e-30
    %v47 = vlog2.pop %v45
    %v48 = vmul.f32 %v47, 0.6931472
    %v49 = vlog2.pop %v46
    %v50 = vmul.f32 %v49, 0.6931472
    %vm51 = vcmp.gt.f32.partialorder %v43, 0.0
    %vm52 = vcmp.gt.f32.partialorder %v44, 0.0
    %54 = vset.pattern.permute.xlu0 0
    %55 = vperm.xlu0 %54, %v42
    %v56 = vpop.permute.xlu0 %55
    %v58 = vmul.f32 %v56, %v48
    %v59 = vmul.f32 %v56, %v50
    %v60 = vmul.f32 %v58, 1.442695
    %v61 = vpow.pop %v60
    %v62 = vmul.f32 %v59, 1.442695
    %v63 = vpow.pop %v62
    %v64 = vsel %vm51, %v61, 0.0
    %v65 = vsel %vm52, %v63, 0.0
    %66 = vset.pattern.permute.xlu0 1
    %67 = vperm.xlu0 %66, %v42
    %v68 = vpop.permute.xlu0 %67
    %v70 = vmul.f32 %v64, %v68
    %v71 = vmul.f32 %v65, %v68
    %v72 = vmax.f32 %v70, 0.0
    %v73 = vmax.f32 %v71, 0.0
    %v74 = vmin.f32 %v72, 1.0
    %v75 = vmin.f32 %v73, 1.0
    %76 = vst [vmem:[#allocation7] sm:$0x3f] %v74
    %77 = vst [vmem:[#allocation7 + $0x8] sm:$0x3f] %v75
    %v78 = vld [vmem:[#allocation5] sm:$0x3f]
    %v79 = vld [vmem:[#allocation5 + $0x8] sm:$0x3f]
    %v80 = vmax.f32 %v78, 1e-30
    %v81 = vmax.f32 %v79, 1e-30
    %v82 = vlog2.pop %v80
    %v83 = vmul.f32 %v82, 0.6931472
    %v84 = vlog2.pop %v81
    %v85 = vmul.f32 %v84, 0.6931472
    %vm86 = vcmp.gt.f32.partialorder %v78, 0.0
    %vm87 = vcmp.gt.f32.partialorder %v79, 0.0
    %v88 = vmul.f32 %v56, %v83
    %v89 = vmul.f32 %v56, %v85
    %v90 = vmul.f32 %v88, 1.442695
    %v91 = vpow.pop %v90
    %v92 = vmul.f32 %v89, 1.442695
    %v93 = vpow.pop %v92
    %v94 = vsel %vm86, %v91, 0.0
    %v95 = vsel %vm87, %v93, 0.0
    %v96 = vmul.f32 %v94, %v68
    %v97 = vmul.f32 %v95, %v68
    %v98 = vmax.f32 %v96, 0.0
    %v99 = vmax.f32 %v97, 0.0
    %v100 = vmin.f32 %v98, 1.0
    %v101 = vmin.f32 %v99, 1.0
    %102 = vst [vmem:[#allocation8] sm:$0x3f] %v100
    %103 = vst [vmem:[#allocation8 + $0x8] sm:$0x3f] %v101
    // Predicated region
    $region22: #{tpu_custom_call.1} parent=1 // pred_check
      _
    $region23: #{tpu_custom_call.1} parent=1 // pred_check_branch
      %105 = sbr.rel (0) target = $region25
    $region24: #{tpu_custom_call.1} parent=1 // pred_region
      %s107 = ssub.s32 256, 256
      %108 = vsyncadd [#allocation4], %s107
      %s110 = sshll.u32 [#allocation7], 4
      %s111 = int_to_ptr.vmem [resolvable:$true] %s110
      %113 = dma.vmem_to_hbm [thread:$0]  %s111, 256, %s3, [#allocation4]
    $region25: #{tpu_custom_call.1} parent=1 // pred_fallthru
      _
    // Predicated region
    $region26: #{tpu_custom_call.1} parent=1 // pred_check
      _
    $region27: #{tpu_custom_call.1} parent=1 // pred_check_branch
      %115 = sbr.rel (0) target = $region29
    $region28: #{tpu_custom_call.1} parent=1 // pred_region
      %s117 = ssub.s32 256, 256
      %118 = vsyncadd [#allocation9], %s117
      %s120 = sshll.u32 [#allocation8], 4
      %s121 = int_to_ptr.vmem [resolvable:$true] %s120
      %123 = dma.vmem_to_hbm [thread:$0]  %s121, 256, %s4, [#allocation9]
    $region29: #{tpu_custom_call.1} parent=1 // pred_fallthru
      _
    // Predicated region
    $region30: #{tpu_custom_call.1} parent=1 // pred_check
      _
    $region31: #{tpu_custom_call.1} parent=1 // pred_check_branch
      %125 = sbr.rel (0) target = $region33
    $region32: #{tpu_custom_call.1} parent=1 // pred_region
      %126 = dma.done [#allocation4], 256
    $region33: #{tpu_custom_call.1} parent=1 // pred_fallthru
      _
    // Predicated region
    $region34: #{tpu_custom_call.1} parent=1 // pred_check
      _
    $region35: #{tpu_custom_call.1} parent=1 // pred_check_branch
      %128 = sbr.rel (0) target = $region37
    $region36: #{tpu_custom_call.1} parent=1 // pred_region
      %129 = dma.done [#allocation9], 256
    $region37: #{tpu_custom_call.1} parent=1 // pred_fallthru
      _
    %130 = vsyncpa [#allocation3], 1
    %131 = vsyncpa [#allocation6], 1
    %132 = vsyncpa [#allocation4], 1
    %133 = vsyncpa [#allocation9], 1

</llo_original>
